<compile_context>
chip_gen: v6e
topology: v6e:2x2x1
jax: 0.10.0
libtpu: 0.0.40
codegen_flags: <defaults>
</compile_context>

<pallas_src>
import functools

import jax
import jax.numpy as jnp
from jax.experimental import pallas as pl
from jax.experimental.pallas import tpu as pltpu

_LANE = 128
_BSUB = 16                   # batch-tile granularity (bf16 sublane pack)
_VMEM_BUDGET = 48 << 20      # stay well under v7x's 64 MiB physical VMEM


def _round_up(n, m):
    return ((n + m - 1) // m) * m


# ---------------------------------------------------------------------------
# Kernel body
# ---------------------------------------------------------------------------
def _head_kernel(x_ref, w1_ref, b1_ref, w2_ref, b2_ref, o_ref, *, act_dtype):
    # dense: [tB, Hp] @ [Hp, Hp] -> f32 accumulation on the MXU
    h = jnp.dot(x_ref[...], w1_ref[...], preferred_element_type=jnp.float32)
    h = h + b1_ref[...]                                  # f32 bias add (VPU)
    # tanh on the EUP; bf16 on the bf16 path (v6e/v7x) so the result feeds the
    # second matmul with no extra f32->bf16 cast pass on the critical path.
    h = jnp.tanh(h.astype(act_dtype))
    # out_proj: [tB, Hp] @ [Hp, Lout] -> f32 accumulation
    o = jnp.dot(h.astype(w2_ref.dtype), w2_ref[...],
                preferred_element_type=jnp.float32)
    o = o + b2_ref[...]
    o_ref[...] = o.astype(o_ref.dtype)
    # TODO(synk): nn.Dropout is identity here (inference semantics); training
    # dropout would need pltpu.prng_seed + pltpu.stateful_bernoulli masks.


def _resident_spec(shape):
    """BlockSpec for an operand whose block is identical for every grid step."""
    idx = lambda i: (0,) * len(shape)
    try:
        # Single buffer: the block never changes, so double-buffering is waste.
        return pl.BlockSpec(shape, idx, pipeline_mode=pl.Buffered(1))
    except TypeError:   # older jax without pipeline_mode= on BlockSpec
        return pl.BlockSpec(shape, idx)


# ---------------------------------------------------------------------------
# One-time weight preparation (do this at model init, not per forward)
# ---------------------------------------------------------------------------
def _pad_cast_2d(w, rows_p, cols_p, dtype):
    r, c = w.shape
    wc = w.astype(dtype)
    if (r, c) == (rows_p, cols_p):
        return wc                       # aligned already: no extra HBM pass
    return jnp.zeros((rows_p, cols_p), dtype).at[:r, :c].set(wc)


def prepare_head_params(w_dense, b_dense, w_out, b_out, *, use_bf16=True):
    """Pad/cast the head weights ONCE.  Weights are in (in, out) layout, i.e.
    the transpose of torch.nn.Linear.weight."""
    H = w_dense.shape[0]
    L = w_out.shape[1]
    mm_dtype = jnp.bfloat16 if use_bf16 else jnp.float32

    Hp = _round_up(H, _LANE)
    # Tiny label counts are kept un-padded: a full-dim (tB, L) output block is
    # legal and avoids 128/L write amplification.  Pad only if L is ragged and
    # already >= 128 (lane-dense stores then win).
    Lout = L if (L % _LANE == 0 or L < _LANE) else _round_up(L, _LANE)

    # Zero padding is mathematically exact: padded hidden columns give
    # tanh(0 + 0) feeding zero rows of w_out, contributing 0 to real logits.
    w1 = _pad_cast_2d(w_dense, Hp, Hp, mm_dtype)
    w2 = _pad_cast_2d(w_out, Hp, Lout, mm_dtype)
    b1 = _pad_cast_2d(b_dense.reshape(1, H), 1, Hp, jnp.float32)
    b2 = _pad_cast_2d(b_out.reshape(1, L), 1, Lout, jnp.float32)

    return dict(w1=w1, b1=b1, w2=w2, b2=b2,
                H=H, L=L, Hp=Hp, Lout=Lout, mm_dtype=mm_dtype)


# ---------------------------------------------------------------------------
# Tiling / VMEM budget
# ---------------------------------------------------------------------------
def _vmem_bytes(tB, Hp, Lout, mm_itemsize, out_itemsize):
    lane_L = max(Lout, _LANE)                          # VMEM lane padding
    x_b = 2 * tB * Hp * mm_itemsize                    # streamed, double-buffered
    w_b = Hp * Hp * mm_itemsize + Hp * lane_L * mm_itemsize   # Buffered(1)
    b_b = 8 * Hp * 4 + 8 * lane_L * 4                  # biases, sublane-padded
    o_b = 2 * tB * lane_L * out_itemsize
    return x_b + w_b + b_b + o_b


def _choose_batch_tile(B, block_b, Hp, Lout, mm_itemsize, out_itemsize):
    Bceil = _round_up(max(B, 1), _BSUB)
    tB = min(_round_up(block_b, _BSUB), Bceil)
    # Keep both v7x TensorCores busy: >= 2 grid steps whenever batch allows.
    if Bceil >= 2 * _BSUB and tB >= Bceil:
        tB = _round_up(Bceil // 2, _BSUB)
    # Shrink until the working set fits the VMEM budget.
    while tB > _BSUB and _vmem_bytes(tB, Hp, Lout, mm_itemsize,
                                     out_itemsize) > _VMEM_BUDGET:
        tB = max(_BSUB, _round_up(tB // 2, _BSUB))
    Bp = _round_up(Bceil, tB)
    return tB, Bp
    # TODO(synk): for Hp >= ~2048 on v7x, add a K-reduction grid axis over the
    # dense weight (f32 VMEM accumulator) instead of keeping Hp x Hp resident.


# ---------------------------------------------------------------------------
# Forward pass
# ---------------------------------------------------------------------------
def model_head_prepared(x, params, *, block_b=512, tanh_in_bf16=None):
    """x: [B, H]; params from prepare_head_params()."""
    B, H = x.shape
    assert H == params["H"], "hidden size mismatch with prepared params"
    Hp, Lout, L = params["Hp"], params["Lout"], params["L"]
    mm_dtype = params["mm_dtype"]
    out_dtype = x.dtype

    if tanh_in_bf16 is None:                 # keep f32 tanh on the f32 path / v5e
        tanh_in_bf16 = (mm_dtype == jnp.bfloat16)
    act_dtype = jnp.bfloat16 if tanh_in_bf16 else jnp.float32

    mm_itemsize = jnp.dtype(mm_dtype).itemsize
    out_itemsize = jnp.dtype(out_dtype).itemsize
    tB, Bp = _choose_batch_tile(B, block_b, Hp, Lout, mm_itemsize, out_itemsize)

    # Only pad x when actually needed; otherwise just cast (single pass).
    xc = x.astype(mm_dtype)
    if (B, H) != (Bp, Hp):
        xc = jnp.zeros((Bp, Hp), mm_dtype).at[:B, :H].set(xc)

    grid = (Bp // tB,)

    needed = _vmem_bytes(tB, Hp, Lout, mm_itemsize, out_itemsize)
    vmem_limit = int(min(64 << 20, max(needed * 5 // 4, 16 << 20)))

    cost = pl.CostEstimate(
        flops=2 * Bp * Hp * Hp + 2 * Bp * Hp * Lout,
        transcendentals=Bp * Hp,
        bytes_accessed=(Bp * Hp * mm_itemsize
                        + Hp * Hp * mm_itemsize
                        + Hp * Lout * mm_itemsize
                        + (Hp + Lout) * 4
                        + Bp * Lout * out_itemsize),
    )

    out = pl.pallas_call(
        functools.partial(_head_kernel, act_dtype=act_dtype),
        out_shape=jax.ShapeDtypeStruct((Bp, Lout), out_dtype),
        grid=grid,
        in_specs=[
            pl.BlockSpec((tB, Hp), lambda i: (i, 0)),   # x: pipelined batch tiles
            _resident_spec((Hp, Hp)),                   # dense W  (resident)
            _resident_spec((1, Hp)),                    # dense b  (resident)
            _resident_spec((Hp, Lout)),                 # out_proj W (resident)
            _resident_spec((1, Lout)),                  # out_proj b (resident)
        ],
        out_specs=pl.BlockSpec((tB, Lout), lambda i: (i, 0)),
        compiler_params=pltpu.CompilerParams(
            dimension_semantics=("parallel",),
            vmem_limit_bytes=vmem_limit,
        ),
        cost_estimate=cost,
    )(xc, params["w1"], params["b1"], params["w2"], params["b2"])

    if (Bp, Lout) != (B, L):
        out = out[:B, :L]
    return out


def model_head(x, w_dense, b_dense, w_out, b_out, *, use_bf16=True, block_b=512):
    """Convenience one-shot wrapper.  For repeated calls, run
    prepare_head_params() once at init and use model_head_prepared()."""
    params = prepare_head_params(w_dense, b_dense, w_out, b_out, use_bf16=use_bf16)
    return model_head_prepared(x, params, block_b=block_b)


def _reference(x, w_dense, b_dense, w_out, b_out):
    h = jnp.tanh(x @ w_dense + b_dense.reshape(1, -1))
    return h @ w_out + b_out.reshape(1, -1)


if __name__ == "__main__":
    # Small shapes consistent with the module: hidden=32, num_labels=4, batch=8.
    B, H, L = 8, 32, 4

    key = jax.random.PRNGKey(0)
    kx, kw1, kb1, kw2, kb2 = jax.random.split(key, 5)

    x = jax.random.normal(kx, (B, H), dtype=jnp.float32)

    # PyTorch nn.Linear stores weight as [out, in]; we keep the (in, out)
    # transpose so the kernel computes x @ W directly.
    w_dense = jax.random.normal(kw1, (H, H), dtype=jnp.float32) * 0.05
    b_dense = jax.random.normal(kb1, (H,), dtype=jnp.float32) * 0.01
    w_out = jax.random.normal(kw2, (H, L), dtype=jnp.float32) * 0.05
    b_out = jax.random.normal(kb2, (L,), dtype=jnp.float32) * 0.01

    ref = _reference(x, w_dense, b_dense, w_out, b_out)

    # f32 path (weights prepared once): tight match with the reference.
    params_f32 = prepare_head_params(w_dense, b_dense, w_out, b_out, use_bf16=False)
    out_f32 = jax.block_until_ready(model_head_prepared(x, params_f32))
    assert out_f32.shape == (B, L)
    assert jnp.allclose(out_f32, ref, atol=1e-5, rtol=1e-5)

    # Default bf16-MXU path (f32 accumulation): looser tolerance vs f32 ref.
    params_bf16 = prepare_head_params(w_dense, b_dense, w_out, b_out, use_bf16=True)
    out_bf16 = jax.block_until_ready(model_head_prepared(x, params_bf16))
    assert out_bf16.shape == (B, L)
    assert jnp.allclose(out_bf16, ref, atol=5e-2, rtol=5e-2)

    # Convenience wrapper smoke test.
    out_conv = jax.block_until_ready(model_head(x, w_dense, b_dense, w_out, b_out))
    assert out_conv.shape == (B, L)
    assert jnp.allclose(out_conv, ref, atol=5e-2, rtol=5e-2)

    print("KERNEL_OK")
</pallas_src>

<mosaic_0001>
module attributes {stable_mosaic.version = 11 : i64} {
  func.func @_head_kernel(%arg0: i32, %arg1: memref<16x128xf32, #tpu.memory_space<vmem>>, %arg2: memref<128x128xf32, #tpu.memory_space<vmem>>, %arg3: memref<1x128xf32, #tpu.memory_space<vmem>>, %arg4: memref<128x4xf32, #tpu.memory_space<vmem>>, %arg5: memref<1x4xf32, #tpu.memory_space<vmem>>, %arg6: memref<16x4xf32, #tpu.memory_space<vmem>>) attributes {dimension_semantics = [#tpu.dimension_semantics<parallel>], iteration_bounds = array<i64: 1>, scalar_prefetch = 0 : i64, scratch_operands = 0 : i64, tpu.core_type = #tpu.core_type<tc>, window_params = [{transform_indices = @transform_0, window_bounds = array<i64: 16, 128>}, {pipeline_mode = #tpu.pipeline_mode<synchronous>, transform_indices = @transform_1, window_bounds = array<i64: 128, 128>}, {pipeline_mode = #tpu.pipeline_mode<synchronous>, transform_indices = @transform_2, window_bounds = array<i64: 1, 128>}, {pipeline_mode = #tpu.pipeline_mode<synchronous>, transform_indices = @transform_3, window_bounds = array<i64: 128, 4>}, {pipeline_mode = #tpu.pipeline_mode<synchronous>, transform_indices = @transform_4, window_bounds = array<i64: 1, 4>}, {transform_indices = @transform_5, window_bounds = array<i64: 16, 4>}]} {
    %c0 = arith.constant 0 : index
    %c0_0 = arith.constant 0 : index
    %0 = vector.load %arg1[%c0, %c0_0] : memref<16x128xf32, #tpu.memory_space<vmem>>, vector<16x128xf32>
    %c0_1 = arith.constant 0 : index
    %c0_2 = arith.constant 0 : index
    %1 = vector.load %arg2[%c0_1, %c0_2] : memref<128x128xf32, #tpu.memory_space<vmem>>, vector<128x128xf32>
    %cst = arith.constant dense<0.000000e+00> : vector<16x128xf32>
    %2 = tpu.matmul %0, %1, %cst {dimension_numbers = #tpu.dot_dimension_numbers<[1], [0], [0], [1], [0, 0, 1, 1], [], []>} : vector<16x128xf32>, vector<128x128xf32>, vector<16x128xf32> -> vector<16x128xf32>
    %c0_3 = arith.constant 0 : index
    %c0_4 = arith.constant 0 : index
    %3 = vector.load %arg3[%c0_3, %c0_4] : memref<1x128xf32, #tpu.memory_space<vmem>>, vector<1x128xf32>
    %4 = vector.broadcast %3 : vector<1x128xf32> to vector<16x128xf32>
    %5 = arith.addf %2, %4 : vector<16x128xf32>
    %6 = math.tanh %5 : vector<16x128xf32>
    %c0_5 = arith.constant 0 : index
    %c0_6 = arith.constant 0 : index
    %7 = vector.load %arg4[%c0_5, %c0_6] : memref<128x4xf32, #tpu.memory_space<vmem>>, vector<128x4xf32>
    %cst_7 = arith.constant dense<0.000000e+00> : vector<16x4xf32>
    %8 = tpu.matmul %6, %7, %cst_7 {dimension_numbers = #tpu.dot_dimension_numbers<[1], [0], [0], [1], [0, 0, 1, 1], [], []>} : vector<16x128xf32>, vector<128x4xf32>, vector<16x4xf32> -> vector<16x4xf32>
    %c0_8 = arith.constant 0 : index
    %c0_9 = arith.constant 0 : index
    %9 = vector.load %arg5[%c0_8, %c0_9] : memref<1x4xf32, #tpu.memory_space<vmem>>, vector<1x4xf32>
    %10 = vector.broadcast %9 : vector<1x4xf32> to vector<16x4xf32>
    %11 = arith.addf %8, %10 : vector<16x4xf32>
    %c0_10 = arith.constant 0 : index
    %c0_11 = arith.constant 0 : index
    %12 = vector.load %arg6[%c0_10, %c0_11] : memref<16x4xf32, #tpu.memory_space<vmem>>, vector<16x4xf32>
    tpu.vector_store %arg6[%c0_10, %c0_11], %11 {strides = array<i32>} : memref<16x4xf32, #tpu.memory_space<vmem>>, vector<16x4xf32>,
    return
  }
  func.func @transform_0(%arg0: i32) -> (i32, i32) {
    %c0_i32 = arith.constant 0 : i32
    %c0_i32_0 = arith.constant 0 : i32
    return %arg0, %c0_i32 : i32, i32
  }
  func.func @transform_1(%arg0: i32) -> (i32, i32) {
    %c0_i32 = arith.constant 0 : i32
    %c0_i32_0 = arith.constant 0 : i32
    %c0_i32_1 = arith.constant 0 : i32
    return %c0_i32, %c0_i32_0 : i32, i32
  }
  func.func @transform_2(%arg0: i32) -> (i32, i32) {
    %c0_i32 = arith.constant 0 : i32
    %c0_i32_0 = arith.constant 0 : i32
    %c0_i32_1 = arith.constant 0 : i32
    return %c0_i32, %c0_i32_0 : i32, i32
  }
  func.func @transform_3(%arg0: i32) -> (i32, i32) {
    %c0_i32 = arith.constant 0 : i32
    %c0_i32_0 = arith.constant 0 : i32
    %c0_i32_1 = arith.constant 0 : i32
    return %c0_i32, %c0_i32_0 : i32, i32
  }
  func.func @transform_4(%arg0: i32) -> (i32, i32) {
    %c0_i32 = arith.constant 0 : i32
    %c0_i32_0 = arith.constant 0 : i32
    %c0_i32_1 = arith.constant 0 : i32
    return %c0_i32, %c0_i32_0 : i32, i32
  }
  func.func @transform_5(%arg0: i32) -> (i32, i32) {
    %c0_i32 = arith.constant 0 : i32
    %c0_i32_0 = arith.constant 0 : i32
    return %arg0, %c0_i32 : i32, i32
  }
}

</mosaic_0001>

<llo_original>
// kernel: tpu_custom_call.1
$region0: #{tpu_custom_call.1}
  #allocation0 [shape = 'u32[]', space=smem, size = 0x4, offset = 0x4, fixed_abs, tag = 'smem constant byte address 0x4 - core index']
  #allocation1 [shape = 'u32[144,128]{1,0:T(1,128)}', space=vmem, size = 0x12000, scoped, tag = 'internal scratch']
  %s0 = inlined_call_operand.hbm [shape: f32[16,128], index: 0, kind: input, shape index: {}]
  %s1 = inlined_call_operand.vmem [shape: f32[128,128], index: 1, kind: input, shape index: {}]
  %s2 = inlined_call_operand.vmem [shape: f32[1,128], index: 2, kind: input, shape index: {}]
  %s3 = inlined_call_operand.vmem [shape: f32[128,4], index: 3, kind: input, shape index: {}]
  %s4 = inlined_call_operand.vmem [shape: f32[1,4], index: 4, kind: input, shape index: {}]
  %s5 = inlined_call_operand.vmem [shape: f32[16,4], index: 5, kind: output, shape index: {}]
  %s6 = sld [smem:[#allocation0]]
  $region34: #{tpu_custom_call.1} parent=0
    _
  %s8 = ssub.s32 1, %s6
  %s9 = scalar_select 0, %s8, %s6
  $region1: #{tpu_custom_call.1} parent=0
    #allocation2 [shape = 'u8[8192]{0}', space=vmem, size = 0x2000, scoped, tag = 'input window, operand 0, single buffered']
    #allocation3 [shape = 's32[1]{0}', space=sflag, size = 0x4, scoped, tag = 'scoped memory for tpu_custom_call.1']
    %10 = vsyncpa [#allocation3], 0
    // Predicated region
    $region2: #{tpu_custom_call.1} parent=1 // pred_check
      _
    $region3: #{tpu_custom_call.1} parent=1 // pred_check_branch
      %12 = sbr.rel (0) target = $region5
    $region4: #{tpu_custom_call.1} parent=1 // pred_region
      %s14 = ssub.s32 256, 256
      %15 = vsyncadd [#allocation3], %s14
      %s16 = sshll.u32 [#allocation2], 4
      %s17 = int_to_ptr.vmem [resolvable:$true] %s16
      %22 = dma.hbm_to_vmem [thread:$0]  %s0, 256, %s17, [#allocation3], 128, 128, 8
    $region5: #{tpu_custom_call.1} parent=1 // pred_fallthru
      _
    // Predicated region
    $region6: #{tpu_custom_call.1} parent=1 // pred_check
      _
    $region7: #{tpu_custom_call.1} parent=1 // pred_check_branch
      %24 = sbr.rel (0) target = $region9
    $region8: #{tpu_custom_call.1} parent=1 // pred_region
      _
    $region9: #{tpu_custom_call.1} parent=1 // pred_fallthru
      _
    // Predicated region
    $region10: #{tpu_custom_call.1} parent=1 // pred_check
      _
    $region11: #{tpu_custom_call.1} parent=1 // pred_check_branch
      %26 = sbr.rel (0) target = $region13
    $region12: #{tpu_custom_call.1} parent=1 // pred_region
      _
    $region13: #{tpu_custom_call.1} parent=1 // pred_fallthru
      _
    // Predicated region
    $region14: #{tpu_custom_call.1} parent=1 // pred_check
      _
    $region15: #{tpu_custom_call.1} parent=1 // pred_check_branch
      %28 = sbr.rel (0) target = $region17
    $region16: #{tpu_custom_call.1} parent=1 // pred_region
      _
    $region17: #{tpu_custom_call.1} parent=1 // pred_fallthru
      _
    // Predicated region
    $region18: #{tpu_custom_call.1} parent=1 // pred_check
      _
    $region19: #{tpu_custom_call.1} parent=1 // pred_check_branch
      %30 = sbr.rel (0) target = $region21
    $region20: #{tpu_custom_call.1} parent=1 // pred_region
      _
    $region21: #{tpu_custom_call.1} parent=1 // pred_fallthru
      _
    // Predicated region
    $region22: #{tpu_custom_call.1} parent=1 // pred_check
      _
    $region23: #{tpu_custom_call.1} parent=1 // pred_check_branch
      %32 = sbr.rel (0) target = $region25
    $region24: #{tpu_custom_call.1} parent=1 // pred_region
      %33 = dma.done [#allocation3], 256
    $region25: #{tpu_custom_call.1} parent=1 // pred_fallthru
      _
    %v34 = vld [vmem:[#allocation2] sm:$0xff]
    %v35 = vld [vmem:[#allocation2 + $0x8] sm:$0xff]
    %v36 = vld [vmem:[%s1] sm:$0xff]
    %v37 = vld [vmem:[%s1 + $0x8] sm:$0xff]
    %v38 = vld [vmem:[%s1 + $0x10] sm:$0xff]
    %v39 = vld [vmem:[%s1 + $0x18] sm:$0xff]
    %v40 = vld [vmem:[%s1 + $0x20] sm:$0xff]
    %v41 = vld [vmem:[%s1 + $0x28] sm:$0xff]
    %v42 = vld [vmem:[%s1 + $0x30] sm:$0xff]
    %v43 = vld [vmem:[%s1 + $0x38] sm:$0xff]
    %v44 = vld [vmem:[%s1 + $0x40] sm:$0xff]
    %v45 = vld [vmem:[%s1 + $0x48] sm:$0xff]
    %v46 = vld [vmem:[%s1 + $0x50] sm:$0xff]
    %v47 = vld [vmem:[%s1 + $0x58] sm:$0xff]
    %v48 = vld [vmem:[%s1 + $0x60] sm:$0xff]
    %v49 = vld [vmem:[%s1 + $0x68] sm:$0xff]
    %v50 = vld [vmem:[%s1 + $0x70] sm:$0xff]
    %v51 = vld [vmem:[%s1 + $0x78] sm:$0xff]
    %v52 = vld [vmem:[%s2] sm:$0x1]
    %v54 = vlaneseq
    %v55 = vshrl.u32 %v54, 7
    %v56 = vsub.s32 0, %v55
    %v57 = vrot.slane %v52, %v56
    %59 = vmatprep.subr.mxu0 0.0
    %60 = vmatpush1.msra.mxu0 %v51
    %61 = vmatprep.subr.mxu0 0.0
    %62 = vmatpush1.msra.mxu0 %v50
    %63 = vmatprep.subr.mxu0 0.0
    %64 = vmatpush1.msra.mxu0 %v49
    %65 = vmatprep.subr.mxu0 0.0
    %66 = vmatpush1.msra.mxu0 %v48
    %67 = vmatprep.subr.mxu0 0.0
    %68 = vmatpush1.msra.mxu0 %v47
    %69 = vmatprep.subr.mxu0 0.0
    %70 = vmatpush1.msra.mxu0 %v46
    %71 = vmatprep.subr.mxu0 0.0
    %72 = vmatpush1.msra.mxu0 %v45
    %73 = vmatprep.subr.mxu0 0.0
    %74 = vmatpush1.msra.mxu0 %v44
    %75 = vmatprep.subr.mxu0 0.0
    %76 = vmatpush1.msra.mxu0 %v43
    %77 = vmatprep.subr.mxu0 0.0
    %78 = vmatpush1.msra.mxu0 %v42
    %79 = vmatprep.subr.mxu0 0.0
    %80 = vmatpush1.msra.mxu0 %v41
    %81 = vmatprep.subr.mxu0 0.0
    %82 = vmatpush1.msra.mxu0 %v40
    %83 = vmatprep.subr.mxu0 0.0
    %84 = vmatpush1.msra.mxu0 %v39
    %85 = vmatprep.subr.mxu0 0.0
    %86 = vmatpush1.msra.mxu0 %v38
    %87 = vmatprep.subr.mxu0 0.0
    %88 = vmatpush1.msra.mxu0 %v37
    %89 = vmatprep.subr.mxu0 0.0
    %90 = vmatpush1.msra.mxu0 %v36
    %91 = vmatprep.subr.mxu0 0.0
    %92 = vmatpush2.msra.mxu0 0.0
    %93 = vmatprep.subr.mxu0 0.0
    %94 = vmatpush2.msra.mxu0 0.0
    %95 = vmatprep.subr.mxu0 0.0
    %96 = vmatpush2.msra.mxu0 0.0
    %97 = vmatprep.subr.mxu0 0.0
    %98 = vmatpush2.msra.mxu0 0.0
    %99 = vmatprep.subr.mxu0 0.0
    %100 = vmatpush2.msra.mxu0 0.0
    %101 = vmatprep.subr.mxu0 0.0
    %102 = vmatpush2.msra.mxu0 0.0
    %103 = vmatprep.subr.mxu0 0.0
    %104 = vmatpush2.msra.mxu0 0.0
    %105 = vmatprep.subr.mxu0 0.0
    %106 = vmatpush2.msra.mxu0 0.0
    %107 = vmatprep.subr.mxu0 0.0
    %108 = vmatpush2.msra.mxu0 0.0
    %109 = vmatprep.subr.mxu0 0.0
    %110 = vmatpush2.msra.mxu0 0.0
    %111 = vmatprep.subr.mxu0 0.0
    %112 = vmatpush2.msra.mxu0 0.0
    %113 = vmatprep.subr.mxu0 0.0
    %114 = vmatpush2.msra.mxu0 0.0
    %115 = vmatprep.subr.mxu0 0.0
    %116 = vmatpush2.msra.mxu0 0.0
    %117 = vmatprep.subr.mxu0 0.0
    %118 = vmatpush2.msra.mxu0 0.0
    %119 = vmatprep.subr.mxu0 0.0
    %120 = vmatpush2.msra.mxu0 0.0
    %121 = vmatprep.subr.mxu0 0.0
    %122 = vmatpush2.msra.mxu0 0.0
    %123 = vmatprep.mubr.f32.mxu0 0.0
    %124 = vmatmul.mubr.f32.gmra.mxu0 %v34
    %v125 = vpop.f32.mrf.mxu0
    %v126 = vadd.f32 %v57, %v125
    %v127 = vpop.f32.mrf.mxu0
    %128 = vmatprep.mubr.f32.mxu0 0.0
    %129 = vmatmul.mubr.f32.gmra.mxu0 %v35
    %v130 = vpop.f32.mrf.mxu0
    %v131 = vadd.f32 %v57, %v130
    %v132 = vpop.f32.mrf.mxu0
    %133 = vdwg.mxu0
    %v134 = vtanh.pop %v126
    %v135 = vtanh.pop %v131
    %v136 = vld [vmem:[%s3] sm:$0xff]
    %v137 = vld [vmem:[%s3 + $0x8] sm:$0xff]
    %v138 = vld [vmem:[%s3 + $0x10] sm:$0xff]
    %v139 = vld [vmem:[%s3 + $0x18] sm:$0xff]
    %v140 = vld [vmem:[%s3 + $0x20] sm:$0xff]
    %v141 = vld [vmem:[%s3 + $0x28] sm:$0xff]
    %v142 = vld [vmem:[%s3 + $0x30] sm:$0xff]
    %v143 = vld [vmem:[%s3 + $0x38] sm:$0xff]
    %v144 = vld [vmem:[%s3 + $0x40] sm:$0xff]
    %v145 = vld [vmem:[%s3 + $0x48] sm:$0xff]
    %v146 = vld [vmem:[%s3 + $0x50] sm:$0xff]
    %v147 = vld [vmem:[%s3 + $0x58] sm:$0xff]
    %v148 = vld [vmem:[%s3 + $0x60] sm:$0xff]
    %v149 = vld [vmem:[%s3 + $0x68] sm:$0xff]
    %v150 = vld [vmem:[%s3 + $0x70] sm:$0xff]
    %v151 = vld [vmem:[%s3 + $0x78] sm:$0xff]
    %v152 = vld [vmem:[%s4] sm:$0x1]
    %v154 = vlaneseq
    %v155 = vshrl.u32 %v154, 7
    %v156 = vsub.s32 0, %v155
    %v157 = vrot.slane %v152, %v156
    %159 = vmatprep.subr.mxu0 0.0
    %160 = vmatpush1.msra.mxu0 %v151
    %161 = vmatprep.subr.mxu0 0.0
    %162 = vmatpush1.msra.mxu0 %v150
    %163 = vmatprep.subr.mxu0 0.0
    %164 = vmatpush1.msra.mxu0 %v149
    %165 = vmatprep.subr.mxu0 0.0
    %166 = vmatpush1.msra.mxu0 %v148
    %167 = vmatprep.subr.mxu0 0.0
    %168 = vmatpush1.msra.mxu0 %v147
    %169 = vmatprep.subr.mxu0 0.0
    %170 = vmatpush1.msra.mxu0 %v146
    %171 = vmatprep.subr.mxu0 0.0
    %172 = vmatpush1.msra.mxu0 %v145
    %173 = vmatprep.subr.mxu0 0.0
    %174 = vmatpush1.msra.mxu0 %v144
    %175 = vmatprep.subr.mxu0 0.0
    %176 = vmatpush1.msra.mxu0 %v143
    %177 = vmatprep.subr.mxu0 0.0
    %178 = vmatpush1.msra.mxu0 %v142
    %179 = vmatprep.subr.mxu0 0.0
    %180 = vmatpush1.msra.mxu0 %v141
    %181 = vmatprep.subr.mxu0 0.0
    %182 = vmatpush1.msra.mxu0 %v140
    %183 = vmatprep.subr.mxu0 0.0
    %184 = vmatpush1.msra.mxu0 %v139
    %185 = vmatprep.subr.mxu0 0.0
    %186 = vmatpush1.msra.mxu0 %v138
    %187 = vmatprep.subr.mxu0 0.0
    %188 = vmatpush1.msra.mxu0 %v137
    %189 = vmatprep.subr.mxu0 0.0
    %190 = vmatpush1.msra.mxu0 %v136
    %191 = vmatprep.subr.mxu0 0.0
    %192 = vmatpush2.msra.mxu0 0.0
    %193 = vmatprep.subr.mxu0 0.0
    %194 = vmatpush2.msra.mxu0 0.0
    %195 = vmatprep.subr.mxu0 0.0
    %196 = vmatpush2.msra.mxu0 0.0
    %197 = vmatprep.subr.mxu0 0.0
    %198 = vmatpush2.msra.mxu0 0.0
    %199 = vmatprep.subr.mxu0 0.0
    %200 = vmatpush2.msra.mxu0 0.0
    %201 = vmatprep.subr.mxu0 0.0
    %202 = vmatpush2.msra.mxu0 0.0
    %203 = vmatprep.subr.mxu0 0.0
    %204 = vmatpush2.msra.mxu0 0.0
    %205 = vmatprep.subr.mxu0 0.0
    %206 = vmatpush2.msra.mxu0 0.0
    %207 = vmatprep.subr.mxu0 0.0
    %208 = vmatpush2.msra.mxu0 0.0
    %209 = vmatprep.subr.mxu0 0.0
    %210 = vmatpush2.msra.mxu0 0.0
    %211 = vmatprep.subr.mxu0 0.0
    %212 = vmatpush2.msra.mxu0 0.0
    %213 = vmatprep.subr.mxu0 0.0
    %214 = vmatpush2.msra.mxu0 0.0
    %215 = vmatprep.subr.mxu0 0.0
    %216 = vmatpush2.msra.mxu0 0.0
    %217 = vmatprep.subr.mxu0 0.0
    %218 = vmatpush2.msra.mxu0 0.0
    %219 = vmatprep.subr.mxu0 0.0
    %220 = vmatpush2.msra.mxu0 0.0
    %221 = vmatprep.subr.mxu0 0.0
    %222 = vmatpush2.msra.mxu0 0.0
    %223 = vmatprep.mubr.f32.mxu0 0.0
    %224 = vmatmul.mubr.f32.gmra.mxu0 %v134
    %v225 = vpop.f32.mrf.mxu0
    %v226 = vadd.f32 %v157, %v225
    %v227 = vpop.f32.mrf.mxu0
    %228 = vmatprep.mubr.f32.mxu0 0.0
    %229 = vmatmul.mubr.f32.gmra.mxu0 %v135
    %v230 = vpop.f32.mrf.mxu0
    %v231 = vadd.f32 %v157, %v230
    %v232 = vpop.f32.mrf.mxu0
    %233 = vdwg.mxu0
    %vm234 = vcmask 31744
    %235 = vst.msk [vmem:[%s5] sm:$0xff] %vm234, %v226
    %236 = vst.msk [vmem:[%s5 + $0x8] sm:$0xff] %vm234, %v231
    // Predicated region
    $region26: #{tpu_custom_call.1} parent=1 // pred_check
      _
    $region27: #{tpu_custom_call.1} parent=1 // pred_check_branch
      %238 = sbr.rel (0) target = $region29
    $region28: #{tpu_custom_call.1} parent=1 // pred_region
      _
    $region29: #{tpu_custom_call.1} parent=1 // pred_fallthru
      _
    // Predicated region
    $region30: #{tpu_custom_call.1} parent=1 // pred_check
      _
    $region31: #{tpu_custom_call.1} parent=1 // pred_check_branch
      %240 = sbr.rel (0) target = $region33
    $region32: #{tpu_custom_call.1} parent=1 // pred_region
      _
    $region33: #{tpu_custom_call.1} parent=1 // pred_fallthru
      _
    %241 = vsyncpa [#allocation3], 1

</llo_original>
